<compile_context>
chip_gen: v7x
topology: tpu7x:2x2x1
jax: 0.10.0
libtpu: 0.0.40
codegen_flags: <defaults>
</compile_context>

<pallas_src>
import functools
import math

import jax
import jax.numpy as jnp
from jax.experimental import pallas as pl
from jax.experimental.pallas import tpu as pltpu

BN_EPS = 1e-5
BN_SCALE = 1.0 / math.sqrt(1.0 + BN_EPS)   # gamma=1, beta=0, mean=0, var=1
LEAKY_SLOPE = 0.01                          # nn.LeakyReLU default

_ARCH = (("layer1", 64, 3, 1),
         ("layer2", 128, 4, 2),
         ("layer3", 256, 23, 2),
         ("layer4", 512, 3, 1))


# ---------------------------------------------------------------------------
# Fused GEMM Pallas kernels (bf16 operands, f32 accumulation)
# ---------------------------------------------------------------------------
def _gemm_kernel(a_ref, b_ref, o_ref, acc_ref, *, act):
    @pl.when(pl.program_id(2) == 0)
    def _():
        acc_ref[...] = jnp.zeros_like(acc_ref)

    acc_ref[...] += jnp.dot(a_ref[...], b_ref[...],
                            preferred_element_type=jnp.float32)

    @pl.when(pl.program_id(2) == pl.num_programs(2) - 1)
    def _():
        out = acc_ref[...]
        if act == "relu":
            out = jnp.maximum(out, 0.0)
        o_ref[...] = out.astype(o_ref.dtype)


def _gemm_res_kernel(a_ref, b_ref, r_ref, o_ref, acc_ref, *, act):
    @pl.when(pl.program_id(2) == 0)
    def _():
        acc_ref[...] = jnp.zeros_like(acc_ref)

    acc_ref[...] += jnp.dot(a_ref[...], b_ref[...],
                            preferred_element_type=jnp.float32)

    @pl.when(pl.program_id(2) == pl.num_programs(2) - 1)
    def _():
        out = acc_ref[...] + r_ref[...].astype(jnp.float32)
        if act == "relu":
            out = jnp.maximum(out, 0.0)
        o_ref[...] = out.astype(o_ref.dtype)


def _rup(x, m):
    return (x + m - 1) // m * m


def _pick_tiles(M, N, K):
    # M tile: M = B*H*W is small in late layers -> shrink tm to avoid padding.
    if M >= 128:
        tm, Mp = 128, _rup(M, 128)
    else:
        tm = _rup(M, 16)
        Mp = tm
    # N tile: lane-dense (multiple of 128); 256 matches the 2x256 MXU (v6e/v7x).
    Np = _rup(N, 128)
    tn = 256 if Np % 256 == 0 else 128
    # K tile: single full-K block when small (amortizes per-step overhead),
    # otherwise a 128-multiple divisor of K.
    Kp = _rup(K, 16)
    if Kp <= 1152:
        tk = Kp
    else:
        tk = None
        for cand in (512, 384, 256, 128):
            if K % cand == 0:
                tk, Kp = cand, K
                break
        if tk is None:
            Kp = _rup(K, 128)
            tk = 128
    return tm, tn, tk, Mp, Np, Kp


def fused_gemm(a, b, residual=None, *, act="none", out_dtype=jnp.bfloat16):
    """out[:M,:N] = act((a @ b) [+ residual]) ; bf16 MXU, f32 accumulate."""
    M, K = a.shape
    _, N = b.shape
    tm, tn, tk, Mp, Np, Kp = _pick_tiles(M, N, K)

    a_p = jnp.pad(a.astype(jnp.bfloat16), ((0, Mp - M), (0, Kp - K)))
    b_p = jnp.pad(b.astype(jnp.bfloat16), ((0, Kp - K), (0, Np - N)))

    in_specs = [
        pl.BlockSpec((tm, tk), lambda i, j, k: (i, k)),
        pl.BlockSpec((tk, tn), lambda i, j, k: (k, j)),
    ]
    operands = [a_p, b_p]
    if residual is not None:
        r_p = jnp.pad(residual.astype(jnp.bfloat16),
                      ((0, Mp - M), (0, Np - N)))
        in_specs.append(pl.BlockSpec((tm, tn), lambda i, j, k: (i, j)))
        operands.append(r_p)
        kernel = functools.partial(_gemm_res_kernel, act=act)
    else:
        kernel = functools.partial(_gemm_kernel, act=act)

    grid = (Mp // tm, Np // tn, Kp // tk)
    out = pl.pallas_call(
        kernel,
        out_shape=jax.ShapeDtypeStruct((Mp, Np), out_dtype),
        grid_spec=pltpu.PrefetchScalarGridSpec(
            num_scalar_prefetch=0,
            grid=grid,
            in_specs=in_specs,
            out_specs=pl.BlockSpec((tm, tn), lambda i, j, k: (i, j)),
            scratch_shapes=[pltpu.VMEM((tm, tn), jnp.float32)],
        ),
        compiler_params=pltpu.CompilerParams(
            dimension_semantics=("parallel", "parallel", "arbitrary"),
            vmem_limit_bytes=32 * 1024 * 1024),
    )(*operands)

    if Mp == M and Np == N:
        return out
    return out[:M, :N]


# ---------------------------------------------------------------------------
# Conv (+folded BN) / pooling built on the fused GEMM kernel
# ---------------------------------------------------------------------------
@functools.partial(jax.jit,
                   static_argnames=("stride", "padding", "act", "out_dtype"))
def conv2d_bn(x, w, *, stride, padding, residual=None, act="none",
              out_dtype=jnp.bfloat16):
    """x: NHWC (bf16), w: PyTorch layout (Cout, Cin, KH, KW) f32.
    BatchNorm (inference defaults) folded into the weights as a constant scale."""
    cout, cin, kh, kw = w.shape
    B = x.shape[0]
    w = w * BN_SCALE                       # fold BN into weights

    if kh == 1 and kw == 1 and padding == 0:
        xs = x[:, ::stride, ::stride, :]
        Ho, Wo = xs.shape[1], xs.shape[2]
        patches = xs.reshape(B * Ho * Wo, cin)
        wm = w.reshape(cout, cin).T
    else:
        xp = jnp.pad(x, ((0, 0), (padding, padding), (padding, padding), (0, 0)))
        Hp, Wp = xp.shape[1], xp.shape[2]
        Ho = (Hp - kh) // stride + 1
        Wo = (Wp - kw) // stride + 1
        cols = [xp[:, i::stride, j::stride, :][:, :Ho, :Wo, :]
                for i in range(kh) for j in range(kw)]
        patches = jnp.concatenate(cols, axis=-1).reshape(
            B * Ho * Wo, kh * kw * cin)                      # bf16 im2col
        wm = jnp.transpose(w, (2, 3, 1, 0)).reshape(kh * kw * cin, cout)

    res2d = None if residual is None else residual.reshape(B * Ho * Wo, cout)
    out = fused_gemm(patches, wm, res2d, act=act, out_dtype=out_dtype)
    return out.reshape(B, Ho, Wo, cout)


def maxpool_3x3_s2_p1(x):
    B, H, W, C = x.shape
    xp = jnp.pad(x, ((0, 0), (1, 1), (1, 1), (0, 0)),
                 constant_values=-jnp.inf)
    Ho = (H + 2 - 3) // 2 + 1
    Wo = (W + 2 - 3) // 2 + 1
    out = None
    for i in range(3):
        for j in range(3):
            s = xp[:, i::2, j::2, :][:, :Ho, :Wo, :]
            out = s if out is None else jnp.maximum(out, s)
    return out


def bottleneck_forward(x, blk, stride):
    out = conv2d_bn(x, blk["conv1"], stride=1, padding=0, act="relu")
    out = conv2d_bn(out, blk["conv2"], stride=stride, padding=1, act="relu")
    if "down" in blk:
        res = conv2d_bn(x, blk["down"], stride=stride, padding=0, act="none")
    else:
        res = x
    # conv3 + bn3 + residual-add + relu fused into one GEMM kernel call
    out = conv2d_bn(out, blk["conv3"], stride=1, padding=0,
                    residual=res, act="relu")
    return out


# ---------------------------------------------------------------------------
# Parameter construction (deterministic, mirrors Model.__init__)
# ---------------------------------------------------------------------------
class _KeyGen:
    def __init__(self, key):
        self.key = key

    def __call__(self):
        self.key, sub = jax.random.split(self.key)
        return sub


def init_params(key, sf_size, num_classes):
    kg = _KeyGen(key)

    def conv_w(cout, cin, kh, kw):  # kaiming_normal_, mode='fan_out', relu
        std = math.sqrt(2.0 / (cout * kh * kw))
        return jax.random.normal(kg(), (cout, cin, kh, kw), jnp.float32) * std

    def linear(in_f, out_f):        # PyTorch default Linear init (uniform)
        bound = 1.0 / math.sqrt(in_f)
        w = jax.random.uniform(kg(), (out_f, in_f), jnp.float32, -bound, bound)
        b = jax.random.uniform(kg(), (out_f,), jnp.float32, -bound, bound)
        return w, b

    params = {"conv1": conv_w(64, 3, 7, 7)}
    inplanes = 64
    for name, planes, blocks, stride in _ARCH:
        layer = []
        for bidx in range(blocks):
            blk = {"conv1": conv_w(planes, inplanes, 1, 1),
                   "conv2": conv_w(planes, planes, 3, 3),
                   "conv3": conv_w(planes * 4, planes, 1, 1)}
            if bidx == 0 and (stride != 1 or inplanes != planes * 4):
                blk["down"] = conv_w(planes * 4, inplanes, 1, 1)
            layer.append(blk)
            inplanes = planes * 4
        params[name] = layer

    feat_dim = 2048
    params["proj1"] = conv_w(feat_dim, feat_dim, 1, 1)
    params["proj2"] = conv_w(feat_dim, feat_dim, 1, 1)
    params["sem_w1"], params["sem_b1"] = linear(sf_size, 1024)
    params["sem_w2"], params["sem_b2"] = linear(1024, feat_dim)
    params["cls_w"], params["cls_b"] = linear(feat_dim, num_classes)
    return params


# ---------------------------------------------------------------------------
# Forward pass (mirrors Model.forward)
# ---------------------------------------------------------------------------
def forward(params, x_nchw, c_att, f_att):
    x = jnp.transpose(x_nchw, (0, 2, 3, 1)).astype(jnp.bfloat16)  # NCHW -> NHWC

    x = conv2d_bn(x, params["conv1"], stride=2, padding=3, act="relu")
    x = maxpool_3x3_s2_p1(x)
    for name, _, blocks, stride in _ARCH:
        for bidx in range(blocks):
            s = stride if bidx == 0 else 1
            x = bottleneck_forward(x, params[name][bidx], s)

    last_conv = jnp.transpose(x, (0, 3, 1, 2)).astype(jnp.float32)  # NCHW

    def proj(w):
        y = conv2d_bn(x, w, stride=1, padding=0, act="relu",
                      out_dtype=jnp.float32)
        return jnp.mean(y, axis=(1, 2))      # AdaptiveAvgPool2d(1) + flatten

    x1 = proj(params["proj1"])
    x2 = proj(params["proj2"])

    # Tiny tail matmuls (M=2 rows, K=16, N<=2048): padding to MXU tiles would
    # waste >98% of the work, so they run through XLA's dot in f32.
    logit_cls = x1 @ params["cls_w"].T + params["cls_b"]

    def sem(a):
        h = a.astype(jnp.float32) @ params["sem_w1"].T + params["sem_b1"]
        h = jnp.where(h >= 0.0, h, LEAKY_SLOPE * h)
        h = h @ params["sem_w2"].T + params["sem_b2"]
        h = jnp.where(h >= 0.0, h, LEAKY_SLOPE * h)
        return h

    def l2norm(v):  # F.normalize(p=2, dim=1)
        return v / jnp.maximum(jnp.linalg.norm(v, axis=1, keepdims=True), 1e-12)

    sem_c = sem(c_att)
    logit_sem = l2norm(x1) @ l2norm(sem_c).T

    sem_f = sem(f_att)
    logit_trans = l2norm(x2) @ l2norm(sem_f).T

    return (logit_cls, logit_sem, logit_trans), last_conv


# ---------------------------------------------------------------------------
if __name__ == "__main__":
    NUM_CLASSES = 10
    SF_SIZE = 16
    B, H, W = 2, 64, 64

    root = jax.random.PRNGKey(0)
    pkey, k_x, k_c, k_f = jax.random.split(root, 4)

    params = init_params(pkey, sf_size=SF_SIZE, num_classes=NUM_CLASSES)

    x = jax.random.normal(k_x, (B, 3, H, W), jnp.float32)        # NCHW input
    c_att = jax.random.normal(k_c, (NUM_CLASSES, SF_SIZE), jnp.float32)
    f_att = jax.random.normal(k_f, (12, SF_SIZE), jnp.float32)

    (logit_cls, logit_sem, logit_trans), last_conv = forward(params, x, c_att, f_att)
    jax.block_until_ready((logit_cls, logit_sem, logit_trans, last_conv))

    assert logit_cls.shape == (B, NUM_CLASSES)
    assert logit_sem.shape == (B, NUM_CLASSES)
    assert logit_trans.shape == (B, 12)
    assert last_conv.shape == (B, 2048, 4, 4)
    print("KERNEL_OK")
</pallas_src>

<mosaic_0001>
module attributes {stable_mosaic.version = 11 : i64} {
  func.func @_gemm_kernel(%arg0: i32, %arg1: i32, %arg2: i32, %arg3: memref<128x160xbf16, #tpu.memory_space<vmem>>, %arg4: memref<160x128xbf16, #tpu.memory_space<vmem>>, %arg5: memref<128x128xbf16, #tpu.memory_space<vmem>>, %arg6: memref<128x128xf32, #tpu.memory_space<vmem>>) attributes {dimension_semantics = [#tpu.dimension_semantics<parallel>, #tpu.dimension_semantics<parallel>, #tpu.dimension_semantics<arbitrary>], iteration_bounds = array<i64: 16, 1, 1>, scalar_prefetch = 0 : i64, scratch_operands = 1 : i64, tpu.core_type = #tpu.core_type<tc>, window_params = [{transform_indices = @transform_0, window_bounds = array<i64: 128, 160>}, {transform_indices = @transform_1, window_bounds = array<i64: 160, 128>}, {transform_indices = @transform_2, window_bounds = array<i64: 128, 128>}]} {
    %c0_i32 = arith.constant 0 : i32
    %0 = arith.cmpi eq, %arg2, %c0_i32 : i32
    %1 = arith.extui %0 : i1 to i32
    %c0_i32_0 = arith.constant 0 : i32
    %2 = arith.cmpi ne, %1, %c0_i32_0 : i32
    scf.if %2 {
      %cst_10 = arith.constant 0.000000e+00 : f32
      %12 = vector.broadcast %cst_10 : f32 to vector<128x128xf32>
      %c0_11 = arith.constant 0 : index
      %c0_12 = arith.constant 0 : index
      %13 = vector.load %arg6[%c0_11, %c0_12] : memref<128x128xf32, #tpu.memory_space<vmem>>, vector<128x128xf32>
      tpu.vector_store %arg6[%c0_11, %c0_12], %12 {strides = array<i32>} : memref<128x128xf32, #tpu.memory_space<vmem>>, vector<128x128xf32>,
    } else {
    }
    %c0 = arith.constant 0 : index
    %c0_1 = arith.constant 0 : index
    %3 = vector.load %arg6[%c0, %c0_1] : memref<128x128xf32, #tpu.memory_space<vmem>>, vector<128x128xf32>
    %c0_2 = arith.constant 0 : index
    %c0_3 = arith.constant 0 : index
    %4 = vector.load %arg3[%c0_2, %c0_3] : memref<128x160xbf16, #tpu.memory_space<vmem>>, vector<128x160xbf16>
    %c0_4 = arith.constant 0 : index
    %c0_5 = arith.constant 0 : index
    %5 = vector.load %arg4[%c0_4, %c0_5] : memref<160x128xbf16, #tpu.memory_space<vmem>>, vector<160x128xbf16>
    %cst = arith.constant dense<0.000000e+00> : vector<128x128xf32>
    %6 = tpu.matmul %4, %5, %cst {dimension_numbers = #tpu.dot_dimension_numbers<[1], [0], [0], [1], [0, 0, 1, 1], [], []>} : vector<128x160xbf16>, vector<160x128xbf16>, vector<128x128xf32> -> vector<128x128xf32>
    %7 = arith.addf %3, %6 : vector<128x128xf32>
    %c0_6 = arith.constant 0 : index
    %c0_7 = arith.constant 0 : index
    %8 = vector.load %arg6[%c0_6, %c0_7] : memref<128x128xf32, #tpu.memory_space<vmem>>, vector<128x128xf32>
    tpu.vector_store %arg6[%c0_6, %c0_7], %7 {strides = array<i32>} : memref<128x128xf32, #tpu.memory_space<vmem>>, vector<128x128xf32>,
    %c0_i32_8 = arith.constant 0 : i32
    %9 = arith.cmpi eq, %arg2, %c0_i32_8 : i32
    %10 = arith.extui %9 : i1 to i32
    %c0_i32_9 = arith.constant 0 : i32
    %11 = arith.cmpi ne, %10, %c0_i32_9 : i32
    scf.if %11 {
      %c0_10 = arith.constant 0 : index
      %c0_11 = arith.constant 0 : index
      %12 = vector.load %arg6[%c0_10, %c0_11] : memref<128x128xf32, #tpu.memory_space<vmem>>, vector<128x128xf32>
      %cst_12 = arith.constant 0.000000e+00 : f32
      %13 = vector.broadcast %cst_12 : f32 to vector<128x128xf32>
      %14 = arith.maximumf %12, %13 : vector<128x128xf32>
      %15 = arith.truncf %14 : vector<128x128xf32> to vector<128x128xbf16>
      %c0_13 = arith.constant 0 : index
      %c0_14 = arith.constant 0 : index
      %16 = vector.load %arg5[%c0_13, %c0_14] : memref<128x128xbf16, #tpu.memory_space<vmem>>, vector<128x128xbf16>
      tpu.vector_store %arg5[%c0_13, %c0_14], %15 {strides = array<i32>} : memref<128x128xbf16, #tpu.memory_space<vmem>>, vector<128x128xbf16>,
    } else {
    }
    return
  }
  func.func @transform_0(%arg0: i32, %arg1: i32, %arg2: i32) -> (i32, i32) {
    %c0_i32 = arith.constant 0 : i32
    return %arg0, %arg2 : i32, i32
  }
  func.func @transform_1(%arg0: i32, %arg1: i32, %arg2: i32) -> (i32, i32) {
    %c0_i32 = arith.constant 0 : i32
    return %arg2, %arg1 : i32, i32
  }
  func.func @transform_2(%arg0: i32, %arg1: i32, %arg2: i32) -> (i32, i32) {
    %c0_i32 = arith.constant 0 : i32
    return %arg0, %arg1 : i32, i32
  }
}

</mosaic_0001>

<llo_original>
// kernel: conv2d_bn.1
$region0: #{conv2d_bn.1}
  #allocation0 [shape = 'u32[]', space=smem, size = 0x4, offset = 0x4, fixed_abs, tag = 'smem constant byte address 0x4 - core index']
  #allocation1 [shape = 'u32[144,128]{1,0:T(1,128)}', space=vmem, size = 0x12000, scoped, tag = 'internal scratch']
  #allocation2 [shape = 'f32[128,128]{1,0:T(8,128)}', space=vmem, size = 0x10000, scoped, tag = 'scratch operand']
  %s0 = inlined_call_operand.vmem [shape: bf16[2048,160], index: 0, kind: input, shape index: {}]
  %s1 = inlined_call_operand.vmem [shape: bf16[160,128], index: 1, kind: input, shape index: {}]
  %s2 = inlined_call_operand.hbm [shape: bf16[2048,128], index: 2, kind: output, shape index: {}]
  %s3 = sld [smem:[#allocation0]]
  $region49: #{conv2d_bn.1} parent=0
    _
  %s5 = ssub.s32 1, %s3
  %s6 = scalar_select 0, %s5, %s3
  $region1: #{conv2d_bn.1} parent=0
    #allocation3 [shape = 'u8[65536]{0}', space=vmem, size = 0x10000, scoped, tag = 'output window, operand 0']
    #allocation4 [shape = 's32[2]{0}', space=sflag, size = 0x8, scoped, tag = 'scoped memory for conv2d_bn.1']
    %7 = vsyncpa [#allocation4], 0
    %s8 = scalar_lea.sflag [#allocation4], 1
    %9 = vsyncpa %s8, 0
    loop: start=0, step=1, limit=18
    $region2: #{conv2d_bn.1} parent=1 // loop_pre_header
      _
    $region3: #{conv2d_bn.1} parent=1 // loop_header
      %s11 = sphi 0, %s15
      %p12 = scmp.ge.s32.totalorder %s11, 18
      %s18 = sphi 0, %s37
      %s19 = sphi 0, %s33
      %s20 = sphi 0, %s29
      %s21 = sphi 0, %s18
      %s22 = sphi 0, %s19
      %s23 = sphi 0, %s20
      %s24 = sphi 0, %s21
      %s25 = sphi 0, %s22
      %s26 = sphi 0, %s23
      %s42 = sphi 0, %s44
      %s45 = sphi 0, %s42
      %s46 = sphi 0, %s45
      %s62 = sphi 0, %s46
      %s70 = sphi 0, %s72
      %s73 = sphi 0, %s70
      %s74 = sphi 0, %s73
      %s90 = sphi 0, %s74
      %s98 = sphi 0, %s100
      %s101 = sphi 0, %s98
      %s102 = sphi 0, %s101
      %s118 = sphi 0, %s102
    $region4: #{conv2d_bn.1} parent=1 // loop_header_branch
      %14 = sbr.rel (%p12) target = $region8
    $region5: #{conv2d_bn.1} parent=1 // loop_body
      %s16 = ssub.s32 %s11, 1
      %s17 = ssub.s32 %s11, 2
      %s27 = sadd.s32 1, %s20
      %p28 = scmp.ge.s32.totalorder %s27, 1
      %s29 = scalar_select %p28, 0, %s27
      %s30 = sadd.s32 1, %s19
      %s31 = scalar_select %p28, %s30, %s19
      %p32 = scmp.ge.s32.totalorder %s31, 1
      %s33 = scalar_select %p32, 0, %s31
      %s34 = sadd.s32 1, %s18
      %s35 = scalar_select %p32, %s34, %s18
      %p36 = scmp.ge.s32.totalorder %s35, 16
      %s37 = scalar_select %p36, 0, %s35
      %s38 = ssub.s32 %s18, %s37
      %s39 = ssub.s32 %s20, %s29
      %s40 = sor.u32 %s38, %s39
      %p41 = scmp.eq.s32.totalorder %s40, 0
      %s43 = sadd.s32 %s42, 1
      %s44 = scalar_select %p41, %s42, %s43
      %p47 = pneg %p41
      %p48 = scmp.eq.s32.totalorder %s11, 15
      %p49 = por %p47, %p48
      %p50 = scmp.ne.s32.totalorder %s42, %s45
      %p51 = scmp.eq.s32.totalorder %s11, 0
      %p52 = por %p50, %p51
      %p53 = scmp.ne.s32.totalorder %s42, %s45
      %p54 = scmp.eq.s32.totalorder %s16, 15
      %p55 = por %p53, %p54
      %p56 = scmp.ne.s32.totalorder %s45, %s46
      %p57 = scmp.eq.s32.totalorder %s16, 0
      %p58 = por %p56, %p57
      %p59 = scmp.ne.s32.totalorder %s45, %s46
      %p60 = scmp.eq.s32.totalorder %s17, 15
      %p61 = por %p59, %p60
      %p63 = scmp.ne.s32.totalorder %s46, %s62
      %p64 = scmp.eq.s32.totalorder %s17, 0
      %p65 = por %p63, %p64
      %s66 = ssub.s32 %s20, %s29
      %s67 = ssub.s32 %s19, %s33
      %s68 = sor.u32 %s66, %s67
      %p69 = scmp.eq.s32.totalorder %s68, 0
      %s71 = sadd.s32 %s70, 1
      %s72 = scalar_select %p69, %s70, %s71
      %p75 = pneg %p69
      %p76 = scmp.eq.s32.totalorder %s11, 15
      %p77 = por %p75, %p76
      %p78 = scmp.ne.s32.totalorder %s70, %s73
      %p79 = scmp.eq.s32.totalorder %s11, 0
      %p80 = por %p78, %p79
      %p81 = scmp.ne.s32.totalorder %s70, %s73
      %p82 = scmp.eq.s32.totalorder %s16, 15
      %p83 = por %p81, %p82
      %p84 = scmp.ne.s32.totalorder %s73, %s74
      %p85 = scmp.eq.s32.totalorder %s16, 0
      %p86 = por %p84, %p85
      %p87 = scmp.ne.s32.totalorder %s73, %s74
      %p88 = scmp.eq.s32.totalorder %s17, 15
      %p89 = por %p87, %p88
      %p91 = scmp.ne.s32.totalorder %s74, %s90
      %p92 = scmp.eq.s32.totalorder %s17, 0
      %p93 = por %p91, %p92
      %s94 = ssub.s32 %s18, %s37
      %s95 = ssub.s32 %s19, %s33
      %s96 = sor.u32 %s94, %s95
      %p97 = scmp.eq.s32.totalorder %s96, 0
      %s99 = sadd.s32 %s98, 1
      %s100 = scalar_select %p97, %s98, %s99
      %p103 = pneg %p97
      %p104 = scmp.eq.s32.totalorder %s11, 15
      %p105 = por %p103, %p104
      %p106 = scmp.ne.s32.totalorder %s98, %s101
      %p107 = scmp.eq.s32.totalorder %s11, 0
      %p108 = por %p106, %p107
      %p109 = scmp.ne.s32.totalorder %s98, %s101
      %p110 = scmp.eq.s32.totalorder %s16, 15
      %p111 = por %p109, %p110
      %p112 = scmp.ne.s32.totalorder %s101, %s102
      %p113 = scmp.eq.s32.totalorder %s16, 0
      %p114 = por %p112, %p113
      %p115 = scmp.ne.s32.totalorder %s101, %s102
      %p116 = scmp.eq.s32.totalorder %s17, 15
      %p117 = por %p115, %p116
      %p119 = scmp.ne.s32.totalorder %s102, %s118
      %p120 = scmp.eq.s32.totalorder %s17, 0
      %p121 = por %p119, %p120
      %p122 = scmp.le.s32.totalorder 1, %s11
      %p123 = scmp.lt.s32.totalorder %s11, 17
      %p124 = pnand %p122, %p123
      %p125 = pneg %p124
      // Predicated region
      $region9: #{conv2d_bn.1} parent=5 // pred_check
        _
      $region10: #{conv2d_bn.1} parent=5 // pred_check_branch
        %127 = sbr.rel (%p124) target = $region12
      $region11: #{conv2d_bn.1} parent=5 // pred_region
        %s128 = ssub.s32 %s11, 1
        // Predicated region
        $region13: #{conv2d_bn.1} parent=11 // pred_check
          %p129 = pneg %p86
        $region14: #{conv2d_bn.1} parent=11 // pred_check_branch
          %131 = sbr.rel (%p129) target = $region16
        $region15: #{conv2d_bn.1} parent=11 // pred_region
          %s132 = smul.u32 20, %s23
          %p133 = scmp.lt.s32.totalorder %s132, 19
          %s134 = scalar_select %p133, %s132, 19
          %p135 = scmp.lt.s32.totalorder %s22, 0
          %s136 = scalar_select %p135, %s22, 0
          %s137 = sadd.s32 %s136, %s134
          %s138 = smul.addr %s137, 4
          %s139 = scalar_lea.vmem %s1, %s138
          %s140 = smul.u32 20, %s23
        $region16: #{conv2d_bn.1} parent=11 // pred_fallthru
          _
      $region12: #{conv2d_bn.1} parent=5 // pred_fallthru
        _
      %p141 = scmp.lt.s32.totalorder %s11, 16
      // Predicated region
      $region17: #{conv2d_bn.1} parent=5 // pred_check
        %p142 = pneg %p141
      $region18: #{conv2d_bn.1} parent=5 // pred_check_branch
        %144 = sbr.rel (%p142) target = $region20
      $region19: #{conv2d_bn.1} parent=5 // pred_region
        // Predicated region
        $region21: #{conv2d_bn.1} parent=19 // pred_check
          %p145 = pneg %p52
        $region22: #{conv2d_bn.1} parent=19 // pred_check_branch
          %147 = sbr.rel (%p145) target = $region24
        $region23: #{conv2d_bn.1} parent=19 // pred_region
          %s148 = smul.u32 16, %s18
          %s149 = smul.u32 2, %s20
          %p150 = scmp.lt.s32.totalorder %s148, 255
          %s151 = scalar_select %p150, %s148, 255
          %p152 = scmp.lt.s32.totalorder %s149, 1
          %s153 = scalar_select %p152, %s149, 1
          %s154 = smul.addr %s151, 2
          %s155 = sadd.s32 %s153, %s154
          %s156 = smul.addr %s155, 4
          %s157 = scalar_lea.vmem %s0, %s156
          %s158 = smul.u32 16, %s18
          %s159 = smul.u32 2, %s20
        $region24: #{conv2d_bn.1} parent=19 // pred_fallthru
          _
      $region20: #{conv2d_bn.1} parent=5 // pred_fallthru
        _
      %p160 = scmp.le.s32.totalorder 1, %s11
      %p161 = scmp.lt.s32.totalorder %s11, 17
      %p162 = pnand %p160, %p161
      %p163 = pneg %p162
      // Predicated region
      $region25: #{conv2d_bn.1} parent=5 // pred_check
        _
      $region26: #{conv2d_bn.1} parent=5 // pred_check_branch
        %165 = sbr.rel (%p162) target = $region28
      $region27: #{conv2d_bn.1} parent=5 // pred_region
        %s166 = ssub.s32 %s11, 1
        %s167 = smul.u32 16, %s21
        %s168 = smul.u32 2, %s23
        %p169 = scmp.lt.s32.totalorder %s167, 255
        %s170 = scalar_select %p169, %s167, 255
        %p171 = scmp.lt.s32.totalorder %s168, 1
        %s172 = scalar_select %p171, %s168, 1
        %s173 = smul.addr %s170, 2
        %s174 = sadd.s32 %s172, %s173
        %s175 = smul.addr %s174, 4
        %s176 = scalar_lea.vmem %s0, %s175
        %p177 = pneg %p58
        %p178 = pneg %p55
        %s179 = smul.u32 20, %s23
        %p180 = scmp.lt.s32.totalorder %s179, 19
        %s181 = scalar_select %p180, %s179, 19
        %p182 = scmp.lt.s32.totalorder %s22, 0
        %s183 = scalar_select %p182, %s22, 0
        %s184 = sadd.s32 %s183, %s181
        %s185 = smul.addr %s184, 4
        %s186 = scalar_lea.vmem %s1, %s185
        %p187 = pneg %p86
        %p188 = pneg %p83
        %p189 = pneg %p114
        %p190 = pneg %p111
        %s191 = sand.u32 %s101, 1
        %s192 = scalar_lea.sflag [#allocation4], %s191
        %s193 = sand.u32 %s101, 1
        %s194 = smul.addr %s193, 64
        %s195 = scalar_lea.vmem [#allocation3], %s194
        %s196 = smul.u32 16, %s21
        %s197 = smul.u32 2, %s23
        %p198 = scmp.lt.s32.totalorder %s196, 255
        %s199 = scalar_select %p198, %s196, 255
        %p200 = scmp.lt.s32.totalorder %s197, 1
        %s201 = scalar_select %p200, %s197, 1
        %s202 = smul.addr %s199, 2
        %s203 = sadd.s32 %s201, %s202
        %s204 = smul.addr %s203, 4
        %s205 = scalar_lea.vmem %s0, %s204
        %s206 = smul.u32 16, %s21
        %s207 = smul.u32 2, %s23
        %s208 = smul.u32 20, %s23
        %p209 = scmp.lt.s32.totalorder %s208, 19
        %s210 = scalar_select %p209, %s208, 19
        %p211 = scmp.lt.s32.totalorder %s22, 0
        %s212 = scalar_select %p211, %s22, 0
        %s213 = sadd.s32 %s212, %s210
        %s214 = smul.addr %s213, 4
        %s215 = scalar_lea.vmem %s1, %s214
        %s216 = smul.u32 20, %s23
        %s217 = smul.u32 16, %s21
        %p219 = scmp.eq.s32.totalorder %s23, 0
        // Predicated region
        $region29: #{conv2d_bn.1} parent=27 // pred_check
          %p220 = pneg %p219
        $region30: #{conv2d_bn.1} parent=27 // pred_check_branch
          %222 = sbr.rel (%p220) target = $region32
        $region31: #{conv2d_bn.1} parent=27 // pred_region
          %223 = vst [vmem:[#allocation2] sm:$0xff] 0.0
          %224 = vst [vmem:[#allocation2 + $0x8] sm:$0xff] 0.0
          %225 = vst [vmem:[#allocation2 + $0x10] sm:$0xff] 0.0
          %226 = vst [vmem:[#allocation2 + $0x18] sm:$0xff] 0.0
          %227 = vst [vmem:[#allocation2 + $0x20] sm:$0xff] 0.0
          %228 = vst [vmem:[#allocation2 + $0x28] sm:$0xff] 0.0
          %229 = vst [vmem:[#allocation2 + $0x30] sm:$0xff] 0.0
          %230 = vst [vmem:[#allocation2 + $0x38] sm:$0xff] 0.0
          %231 = vst [vmem:[#allocation2 + $0x40] sm:$0xff] 0.0
          %232 = vst [vmem:[#allocation2 + $0x48] sm:$0xff] 0.0
          %233 = vst [vmem:[#allocation2 + $0x50] sm:$0xff] 0.0
          %234 = vst [vmem:[#allocation2 + $0x58] sm:$0xff] 0.0
          %235 = vst [vmem:[#allocation2 + $0x60] sm:$0xff] 0.0
          %236 = vst [vmem:[#allocation2 + $0x68] sm:$0xff] 0.0
          %237 = vst [vmem:[#allocation2 + $0x70] sm:$0xff] 0.0
          %238 = vst [vmem:[#allocation2 + $0x78] sm:$0xff] 0.0
        $region32: #{conv2d_bn.1} parent=27 // pred_fallthru
          _
        %v239 = vld [vmem:[#allocation2] sm:$0xff]
        %v240 = vld [vmem:[#allocation2 + $0x8] sm:$0xff]
        %v241 = vld [vmem:[#allocation2 + $0x10] sm:$0xff]
        %v242 = vld [vmem:[#allocation2 + $0x18] sm:$0xff]
        %v243 = vld [vmem:[#allocation2 + $0x20] sm:$0xff]
        %v244 = vld [vmem:[#allocation2 + $0x28] sm:$0xff]
        %v245 = vld [vmem:[#allocation2 + $0x30] sm:$0xff]
        %v246 = vld [vmem:[#allocation2 + $0x38] sm:$0xff]
        %v247 = vld [vmem:[#allocation2 + $0x40] sm:$0xff]
        %v248 = vld [vmem:[#allocation2 + $0x48] sm:$0xff]
        %v249 = vld [vmem:[#allocation2 + $0x50] sm:$0xff]
        %v250 = vld [vmem:[#allocation2 + $0x58] sm:$0xff]
        %v251 = vld [vmem:[#allocation2 + $0x60] sm:$0xff]
        %v252 = vld [vmem:[#allocation2 + $0x68] sm:$0xff]
        %v253 = vld [vmem:[#allocation2 + $0x70] sm:$0xff]
        %v254 = vld [vmem:[#allocation2 + $0x78] sm:$0xff]
        %v255 = vld [vmem:[%s205] sm:$0xff]
        %v256 = vld [vmem:[%s205 + $0x8] sm:$0xff]
        %v257 = vld [vmem:[%s205 + $0x10] sm:$0xff]
        %v258 = vld [vmem:[%s205 + $0x18] sm:$0xff]
        %v259 = vld [vmem:[%s205 + $0x20] sm:$0xff]
        %v260 = vld [vmem:[%s205 + $0x28] sm:$0xff]
        %v261 = vld [vmem:[%s205 + $0x30] sm:$0xff]
        %v262 = vld [vmem:[%s205 + $0x38] sm:$0xff]
        %v263 = vld [vmem:[%s205 + $0x40] sm:$0xff]
        %v264 = vld [vmem:[%s205 + $0x48] sm:$0xff]
        %v265 = vld [vmem:[%s205 + $0x50] sm:$0xff]
        %v266 = vld [vmem:[%s205 + $0x58] sm:$0xff]
        %v267 = vld [vmem:[%s205 + $0x60] sm:$0xff]
        %v268 = vld [vmem:[%s205 + $0x68] sm:$0xff]
        %v269 = vld [vmem:[%s205 + $0x70] sm:$0xff]
        %v270 = vld [vmem:[%s205 + $0x78] sm:$0xff]
        %v271 = vld [vmem:[%s215] sm:$0xf]
        %v272 = vld [vmem:[%s215 + $0x4] sm:$0xf]
        %v273 = vld [vmem:[%s215 + $0x8] sm:$0xf]
        %v274 = vld [vmem:[%s215 + $0xc] sm:$0xf]
        %v275 = vld [vmem:[%s215 + $0x10] sm:$0xf]
        %v276 = vld [vmem:[%s215 + $0x14] sm:$0xf]
        %v277 = vld [vmem:[%s215 + $0x18] sm:$0xf]
        %v278 = vld [vmem:[%s215 + $0x1c] sm:$0xf]
        %v279 = vld [vmem:[%s215 + $0x20] sm:$0xf]
        %v280 = vld [vmem:[%s215 + $0x24] sm:$0xf]
        %v281 = vld [vmem:[%s215 + $0x28] sm:$0xf]
        %v282 = vld [vmem:[%s215 + $0x2c] sm:$0xf]
        %v283 = vld [vmem:[%s215 + $0x30] sm:$0xf]
        %v284 = vld [vmem:[%s215 + $0x34] sm:$0xf]
        %v285 = vld [vmem:[%s215 + $0x38] sm:$0xf]
        %v286 = vld [vmem:[%s215 + $0x3c] sm:$0xf]
        %v287 = vld [vmem:[%s215 + $0x40] sm:$0xf]
        %v288 = vld [vmem:[%s215 + $0x44] sm:$0xf]
        %v289 = vld [vmem:[%s215 + $0x48] sm:$0xf]
        %v290 = vld [vmem:[%s215 + $0x4c] sm:$0xf]
        %v307 = vunpack.c.l.b16 %v255
        %v308 = vunpack.c.h.b16 %v255
        %v309 = vunpack.c.l.b16 %v256
        %v310 = vunpack.c.h.b16 %v256
        %v311 = vunpack.c.l.b16 %v257
        %v312 = vunpack.c.h.b16 %v257
        %v313 = vunpack.c.l.b16 %v258
        %v314 = vunpack.c.h.b16 %v258
        %v315 = vunpack.c.l.b16 %v259
        %v316 = vunpack.c.h.b16 %v259
        %v317 = vunpack.c.l.b16 %v260
        %v318 = vunpack.c.h.b16 %v260
        %v319 = vunpack.c.l.b16 %v261
        %v320 = vunpack.c.h.b16 %v261
        %v321 = vunpack.c.l.b16 %v262
        %v322 = vunpack.c.h.b16 %v262
        %v323 = vunpack.c.l.b16 %v263
        %v324 = vunpack.c.h.b16 %v263
        %v325 = vunpack.c.l.b16 %v264
        %v326 = vunpack.c.h.b16 %v264
        %v327 = vunpack.c.l.b16 %v265
        %v328 = vunpack.c.h.b16 %v265
        %v329 = vunpack.c.l.b16 %v266
        %v330 = vunpack.c.h.b16 %v266
        %v331 = vunpack.c.l.b16 %v267
        %v332 = vunpack.c.h.b16 %v267
        %v333 = vunpack.c.l.b16 %v268
        %v334 = vunpack.c.h.b16 %v268
        %v335 = vunpack.c.l.b16 %v269
        %v336 = vunpack.c.h.b16 %v269
        %v337 = vunpack.c.l.b16 %v270
        %v338 = vunpack.c.h.b16 %v270
        %v339 = vpack.c.b16 %v309, %v307
        %v340 = vpack.c.b16 %v310, %v308
        %v341 = vpack.c.b16 %v313, %v311
        %v342 = vpack.c.b16 %v314, %v312
        %v343 = vpack.c.b16 %v317, %v315
        %v344 = vpack.c.b16 %v318, %v316
        %v345 = vpack.c.b16 %v321, %v319
        %v346 = vpack.c.b16 %v322, %v320
        %v347 = vpack.c.b16 %v325, %v323
        %v348 = vpack.c.b16 %v326, %v324
        %v349 = vpack.c.b16 %v329, %v327
        %v350 = vpack.c.b16 %v330, %v328
        %v351 = vpack.c.b16 %v333, %v331
        %v352 = vpack.c.b16 %v334, %v332
        %v353 = vpack.c.b16 %v337, %v335
        %v354 = vpack.c.b16 %v338, %v336
        %v383 = vunpack.c.l.b16 %v271
        %v384 = vunpack.c.l.b16 %v272
        %v385 = vunpack.c.l.b16 %v273
        %v386 = vunpack.c.l.b16 %v274
        %v387 = vunpack.c.l.b16 %v275
        %v388 = vunpack.c.l.b16 %v276
        %v389 = vunpack.c.l.b16 %v277
        %v390 = vunpack.c.l.b16 %v278
        %v391 = vunpack.c.l.b16 %v279
        %v392 = vunpack.c.l.b16 %v280
        %v393 = vunpack.c.l.b16 %v281
        %v394 = vunpack.c.l.b16 %v282
        %v395 = vunpack.c.l.b16 %v283
        %v396 = vunpack.c.l.b16 %v284
        %v397 = vunpack.c.l.b16 %v285
        %v398 = vunpack.c.l.b16 %v286
        %v399 = vunpack.c.l.b16 %v287
        %v400 = vunpack.c.l.b16 %v288
        %v401 = vunpack.c.l.b16 %v289
        %v402 = vunpack.c.l.b16 %v290
        %v403 = vpack.c.b16 %v384, %v383
        %v404 = vpack.c.b16 %v386, %v385
        %v405 = vpack.c.b16 %v388, %v387
        %v406 = vpack.c.b16 %v390, %v389
        %v407 = vpack.c.b16 %v392, %v391
        %v408 = vpack.c.b16 %v394, %v393
        %v409 = vpack.c.b16 %v396, %v395
        %v410 = vpack.c.b16 %v398, %v397
        %v411 = vpack.c.b16 %v400, %v399
        %v412 = vpack.c.b16 %v402, %v401
        %vm423 = vcmask 261120
        %v425 = vsel %vm423, %v340, 0
        %v428 = vsel %vm423, %v342, 0
        %v431 = vsel %vm423, %v344, 0
        %v434 = vsel %vm423, %v346, 0
        %v437 = vsel %vm423, %v348, 0
        %v440 = vsel %vm423, %v350, 0
        %v443 = vsel %vm423, %v352, 0
        %v446 = vsel %vm423, %v354, 0
        %448 = vmatprep.subr.bf16.mxu0 0
        %449 = vmatpush1.bf16.msra.mxu0 %v403
        %450 = vmatprep.subr.bf16.mxu0 0
        %451 = vmatpush1.bf16.msra.mxu0 %v404
        %452 = vmatprep.subr.bf16.mxu0 0
        %453 = vmatpush1.bf16.msra.mxu0 %v405
        %454 = vmatprep.subr.bf16.mxu0 0
        %455 = vmatpush1.bf16.msra.mxu0 %v406
        %456 = vmatprep.subr.bf16.mxu0 0
        %457 = vmatpush1.bf16.msra.mxu0 %v407
        %458 = vmatprep.subr.bf16.mxu0 0
        %459 = vmatpush1.bf16.msra.mxu0 %v408
        %460 = vmatprep.subr.bf16.mxu0 0
        %461 = vmatpush1.bf16.msra.mxu0 %v409
        %462 = vmatprep.subr.bf16.mxu0 0
        %463 = vmatpush1.bf16.msra.mxu0 %v410
        %464 = vmatprep.subr.bf16.mxu0 0
        %465 = vmatpush1.bf16.msra.mxu0 %v411
        %466 = vmatprep.subr.bf16.mxu0 0
        %467 = vmatpush1.bf16.msra.mxu0 %v412
        %468 = vmatprep.subr.bf16.mxu0 0
        %469 = vmatpush1.bf16.msra.mxu0 0
        %470 = vmatprep.subr.bf16.mxu0 0
        %471 = vmatpush1.bf16.msra.mxu0 0
        %472 = vmatprep.subr.bf16.mxu0 0
        %473 = vmatpush1.bf16.msra.mxu0 0
        %474 = vmatprep.subr.bf16.mxu0 0
        %475 = vmatpush1.bf16.msra.mxu0 0
        %476 = vmatprep.subr.bf16.mxu0 0
        %477 = vmatpush1.bf16.msra.mxu0 0
        %478 = vmatprep.subr.bf16.mxu0 0
        %479 = vmatpush1.bf16.msra.mxu0 0
        %480 = vmatprep.mubr.bf16.mxu0 %v425
        %481 = vmatmul.mubr.bf16.gmra.mrb[0].mxu0 %v339
        %v482 = vpop.f32.mrb[0].mxu0
        %v483 = vadd.f32 0.0, %v482
        %v484 = vpop.f32.mrb[0].mxu0
        %v485 = vpop.f32.mrb[0].mxu0
        %v486 = vadd.f32 0.0, %v485
        %v487 = vpop.f32.mrb[0].mxu0
        %488 = vmatprep.mubr.bf16.mxu0 %v428
        %489 = vmatmul.mubr.bf16.gmra.mrb[0].mxu0 %v341
        %v490 = vpop.f32.mrb[0].mxu0
        %v491 = vadd.f32 0.0, %v490
        %v492 = vpop.f32.mrb[0].mxu0
        %v493 = vpop.f32.mrb[0].mxu0
        %v494 = vadd.f32 0.0, %v493
        %v495 = vpop.f32.mrb[0].mxu0
        %496 = vmatprep.mubr.bf16.mxu0 %v431
        %497 = vmatmul.mubr.bf16.gmra.mrb[0].mxu0 %v343
        %v498 = vpop.f32.mrb[0].mxu0
        %v499 = vadd.f32 0.0, %v498
        %v500 = vpop.f32.mrb[0].mxu0
        %v501 = vpop.f32.mrb[0].mxu0
        %v502 = vadd.f32 0.0, %v501
        %v503 = vpop.f32.mrb[0].mxu0
        %504 = vmatprep.mubr.bf16.mxu0 %v434
        %505 = vmatmul.mubr.bf16.gmra.mrb[0].mxu0 %v345
        %v506 = vpop.f32.mrb[0].mxu0
        %v507 = vadd.f32 0.0, %v506
        %v508 = vpop.f32.mrb[0].mxu0
        %v509 = vpop.f32.mrb[0].mxu0
        %v510 = vadd.f32 0.0, %v509
        %v511 = vpop.f32.mrb[0].mxu0
        %512 = vmatprep.mubr.bf16.mxu0 %v437
        %513 = vmatmul.mubr.bf16.gmra.mrb[0].mxu0 %v347
        %v514 = vpop.f32.mrb[0].mxu0
        %v515 = vadd.f32 0.0, %v514
        %v516 = vpop.f32.mrb[0].mxu0
        %v517 = vpop.f32.mrb[0].mxu0
        %v518 = vadd.f32 0.0, %v517
        %v519 = vpop.f32.mrb[0].mxu0
        %520 = vmatprep.mubr.bf16.mxu0 %v440
        %521 = vmatmul.mubr.bf16.gmra.mrb[0].mxu0 %v349
        %v522 = vpop.f32.mrb[0].mxu0
        %v523 = vadd.f32 0.0, %v522
        %v524 = vpop.f32.mrb[0].mxu0
        %v525 = vpop.f32.mrb[0].mxu0
        %v526 = vadd.f32 0.0, %v525
        %v527 = vpop.f32.mrb[0].mxu0
        %528 = vmatprep.mubr.bf16.mxu0 %v443
        %529 = vmatmul.mubr.bf16.gmra.mrb[0].mxu0 %v351
        %v530 = vpop.f32.mrb[0].mxu0
        %v531 = vadd.f32 0.0, %v530
        %v532 = vpop.f32.mrb[0].mxu0
        %v533 = vpop.f32.mrb[0].mxu0
        %v534 = vadd.f32 0.0, %v533
        %v535 = vpop.f32.mrb[0].mxu0
        %536 = vmatprep.mubr.bf16.mxu0 %v446
        %537 = vmatmul.mubr.bf16.gmra.mrb[0].mxu0 %v353
        %v538 = vpop.f32.mrb[0].mxu0
        %v539 = vadd.f32 0.0, %v538
        %v540 = vpop.f32.mrb[0].mxu0
        %v541 = vpop.f32.mrb[0].mxu0
        %v542 = vadd.f32 0.0, %v541
        %v543 = vpop.f32.mrb[0].mxu0
        %544 = vdwg.mxu0
        %v545 = vadd.f32 %v239, %v483
        %v546 = vadd.f32 %v240, %v486
        %v547 = vadd.f32 %v241, %v491
        %v548 = vadd.f32 %v242, %v494
        %v549 = vadd.f32 %v243, %v499
        %v550 = vadd.f32 %v244, %v502
        %v551 = vadd.f32 %v245, %v507
        %v552 = vadd.f32 %v246, %v510
        %v553 = vadd.f32 %v247, %v515
        %v554 = vadd.f32 %v248, %v518
        %v555 = vadd.f32 %v249, %v523
        %v556 = vadd.f32 %v250, %v526
        %v557 = vadd.f32 %v251, %v531
        %v558 = vadd.f32 %v252, %v534
        %v559 = vadd.f32 %v253, %v539
        %v560 = vadd.f32 %v254, %v542
        %561 = vst [vmem:[#allocation2] sm:$0xff] %v545
        %562 = vst [vmem:[#allocation2 + $0x8] sm:$0xff] %v546
        %563 = vst [vmem:[#allocation2 + $0x10] sm:$0xff] %v547
        %564 = vst [vmem:[#allocation2 + $0x18] sm:$0xff] %v548
        %565 = vst [vmem:[#allocation2 + $0x20] sm:$0xff] %v549
        %566 = vst [vmem:[#allocation2 + $0x28] sm:$0xff] %v550
        %567 = vst [vmem:[#allocation2 + $0x30] sm:$0xff] %v551
        %568 = vst [vmem:[#allocation2 + $0x38] sm:$0xff] %v552
        %569 = vst [vmem:[#allocation2 + $0x40] sm:$0xff] %v553
        %570 = vst [vmem:[#allocation2 + $0x48] sm:$0xff] %v554
        %571 = vst [vmem:[#allocation2 + $0x50] sm:$0xff] %v555
        %572 = vst [vmem:[#allocation2 + $0x58] sm:$0xff] %v556
        %573 = vst [vmem:[#allocation2 + $0x60] sm:$0xff] %v557
        %574 = vst [vmem:[#allocation2 + $0x68] sm:$0xff] %v558
        %575 = vst [vmem:[#allocation2 + $0x70] sm:$0xff] %v559
        %576 = vst [vmem:[#allocation2 + $0x78] sm:$0xff] %v560
        // Predicated region
        $region33: #{conv2d_bn.1} parent=27 // pred_check
          %p577 = pneg %p219
        $region34: #{conv2d_bn.1} parent=27 // pred_check_branch
          %579 = sbr.rel (%p577) target = $region36
        $region35: #{conv2d_bn.1} parent=27 // pred_region
          %v580 = vld [vmem:[#allocation2] sm:$0xff]
          %v581 = vld [vmem:[#allocation2 + $0x8] sm:$0xff]
          %v582 = vld [vmem:[#allocation2 + $0x10] sm:$0xff]
          %v583 = vld [vmem:[#allocation2 + $0x18] sm:$0xff]
          %v584 = vld [vmem:[#allocation2 + $0x20] sm:$0xff]
          %v585 = vld [vmem:[#allocation2 + $0x28] sm:$0xff]
          %v586 = vld [vmem:[#allocation2 + $0x30] sm:$0xff]
          %v587 = vld [vmem:[#allocation2 + $0x38] sm:$0xff]
          %v588 = vld [vmem:[#allocation2 + $0x40] sm:$0xff]
          %v589 = vld [vmem:[#allocation2 + $0x48] sm:$0xff]
          %v590 = vld [vmem:[#allocation2 + $0x50] sm:$0xff]
          %v591 = vld [vmem:[#allocation2 + $0x58] sm:$0xff]
          %v592 = vld [vmem:[#allocation2 + $0x60] sm:$0xff]
          %v593 = vld [vmem:[#allocation2 + $0x68] sm:$0xff]
          %v594 = vld [vmem:[#allocation2 + $0x70] sm:$0xff]
          %v595 = vld [vmem:[#allocation2 + $0x78] sm:$0xff]
          %v596 = vmax.f32 %v580, 0.0
          %v597 = vmax.f32 %v581, 0.0
          %v598 = vmax.f32 %v582, 0.0
          %v599 = vmax.f32 %v583, 0.0
          %v600 = vmax.f32 %v584, 0.0
          %v601 = vmax.f32 %v585, 0.0
          %v602 = vmax.f32 %v586, 0.0
          %v603 = vmax.f32 %v587, 0.0
          %v604 = vmax.f32 %v588, 0.0
          %v605 = vmax.f32 %v589, 0.0
          %v606 = vmax.f32 %v590, 0.0
          %v607 = vmax.f32 %v591, 0.0
          %v608 = vmax.f32 %v592, 0.0
          %v609 = vmax.f32 %v593, 0.0
          %v610 = vmax.f32 %v594, 0.0
          %v611 = vmax.f32 %v595, 0.0
          %v612 = vpack.c.bf16 %v597, %v596
          %v613 = vpack.c.bf16 %v599, %v598
          %v614 = vpack.c.bf16 %v601, %v600
          %v615 = vpack.c.bf16 %v603, %v602
          %v616 = vpack.c.bf16 %v605, %v604
          %v617 = vpack.c.bf16 %v607, %v606
          %v618 = vpack.c.bf16 %v609, %v608
          %v619 = vpack.c.bf16 %v611, %v610
          %v628 = vunpack.c.l.b16 %v612
          %v629 = vunpack.c.h.b16 %v612
          %v630 = vunpack.c.l.b16 %v613
          %v631 = vunpack.c.h.b16 %v613
          %v632 = vunpack.c.l.b16 %v614
          %v633 = vunpack.c.h.b16 %v614
          %v634 = vunpack.c.l.b16 %v615
          %v635 = vunpack.c.h.b16 %v615
          %v636 = vunpack.c.l.b16 %v616
          %v637 = vunpack.c.h.b16 %v616
          %v638 = vunpack.c.l.b16 %v617
          %v639 = vunpack.c.h.b16 %v617
          %v640 = vunpack.c.l.b16 %v618
          %v641 = vunpack.c.h.b16 %v618
          %v642 = vunpack.c.l.b16 %v619
          %v643 = vunpack.c.h.b16 %v619
          %v644 = vpack.c.b16 %v628, %v628
          %v645 = vpack.c.b16 %v629, %v629
          %v646 = vpack.c.b16 %v630, %v630
          %v647 = vpack.c.b16 %v631, %v631
          %v648 = vpack.c.b16 %v632, %v632
          %v649 = vpack.c.b16 %v633, %v633
          %v650 = vpack.c.b16 %v634, %v634
          %v651 = vpack.c.b16 %v635, %v635
          %v652 = vpack.c.b16 %v636, %v636
          %v653 = vpack.c.b16 %v637, %v637
          %v654 = vpack.c.b16 %v638, %v638
          %v655 = vpack.c.b16 %v639, %v639
          %v656 = vpack.c.b16 %v640, %v640
          %v657 = vpack.c.b16 %v641, %v641
          %v658 = vpack.c.b16 %v642, %v642
          %v659 = vpack.c.b16 %v643, %v643
          %676 = vst [vmem:[%s195] sm:$0xf] %v644
          %677 = vst [vmem:[%s195 + $0x4] sm:$0xf] %v645
          %678 = vst [vmem:[%s195 + $0x8] sm:$0xf] %v646
          %679 = vst [vmem:[%s195 + $0xc] sm:$0xf] %v647
          %680 = vst [vmem:[%s195 + $0x10] sm:$0xf] %v648
          %681 = vst [vmem:[%s195 + $0x14] sm:$0xf] %v649
          %682 = vst [vmem:[%s195 + $0x18] sm:$0xf] %v650
          %683 = vst [vmem:[%s195 + $0x1c] sm:$0xf] %v651
          %684 = vst [vmem:[%s195 + $0x20] sm:$0xf] %v652
          %685 = vst [vmem:[%s195 + $0x24] sm:$0xf] %v653
          %686 = vst [vmem:[%s195 + $0x28] sm:$0xf] %v654
          %687 = vst [vmem:[%s195 + $0x2c] sm:$0xf] %v655
          %688 = vst [vmem:[%s195 + $0x30] sm:$0xf] %v656
          %689 = vst [vmem:[%s195 + $0x34] sm:$0xf] %v657
          %690 = vst [vmem:[%s195 + $0x38] sm:$0xf] %v658
          %691 = vst [vmem:[%s195 + $0x3c] sm:$0xf] %v659
        $region36: #{conv2d_bn.1} parent=27 // pred_fallthru
          _
        %s692 = sand.u32 %s101, 1
        %s693 = scalar_lea.sflag [#allocation4], %s692
        %s694 = sand.u32 %s101, 1
        %s695 = smul.addr %s694, 64
        %s696 = scalar_lea.vmem [#allocation3], %s695
        // Predicated region
        $region37: #{conv2d_bn.1} parent=27 // pred_check
          %p697 = pneg %p111
        $region38: #{conv2d_bn.1} parent=27 // pred_check_branch
          %699 = sbr.rel (%p697) target = $region40
        $region39: #{conv2d_bn.1} parent=27 // pred_region
          %s700 = smul.u32 16, %s21
          %s702 = ssub.s32 1024, 1024
          %703 = vsyncadd %s693, %s702
          %s704 = sadd.s32 %s22, %s700
          %s705 = smul.addr %s704, 64
          %s706 = scalar_lea.hbm %s2, %s705
          %s707 = sshll.u32 %s696, 4
          %s708 = int_to_ptr.vmem [resolvable:$true] %s707
          %713 = dma.vmem_to_hbm [thread:$0]  %s708, 1024, %s706, %s693, 64, 64, 4
        $region40: #{conv2d_bn.1} parent=27 // pred_fallthru
          _
      $region28: #{conv2d_bn.1} parent=5 // pred_fallthru
        _
      %p714 = scmp.le.s32.totalorder 2, %s11
      // Predicated region
      $region41: #{conv2d_bn.1} parent=5 // pred_check
        %p715 = pneg %p714
      $region42: #{conv2d_bn.1} parent=5 // pred_check_branch
        %717 = sbr.rel (%p715) target = $region44
      $region43: #{conv2d_bn.1} parent=5 // pred_region
        %s718 = ssub.s32 %s11, 2
        // Predicated region
        $region45: #{conv2d_bn.1} parent=43 // pred_check
          %p719 = pneg %p117
        $region46: #{conv2d_bn.1} parent=43 // pred_check_branch
          %721 = sbr.rel (%p719) target = $region48
        $region47: #{conv2d_bn.1} parent=43 // pred_region
          %s722 = sand.u32 %s102, 1
          %s723 = scalar_lea.sflag [#allocation4], %s722
          %s724 = sand.u32 %s102, 1
          %s725 = smul.addr %s724, 64
          %s726 = scalar_lea.vmem [#allocation3], %s725
          %727 = dma.done %s723, 1024
        $region48: #{conv2d_bn.1} parent=43 // pred_fallthru
          _
      $region44: #{conv2d_bn.1} parent=5 // pred_fallthru
        _
    $region6: #{conv2d_bn.1} parent=1 // loop_footer
      %s15 = sadd.s32 1, %s11
    $region7: #{conv2d_bn.1} parent=1 // loop_footer_branch
      %10 = sbr.rel target = $region3
    $region8: #{conv2d_bn.1} parent=1 // loop_exit
      _
    %728 = vsyncpa [#allocation4], 1
    %s729 = scalar_lea.sflag [#allocation4], 1
    %730 = vsyncpa %s729, 1

</llo_original>
